<compile_context>
chip_gen: v6e
topology: v6e:2x2x1
jax: 0.10.0
libtpu: 0.0.40
codegen_flags: <defaults>
</compile_context>

<pallas_src>
import functools

import jax
import jax.numpy as jnp
from jax.experimental import pallas as pl
from jax.experimental.pallas import tpu as pltpu


def _class_update_kernel(e_ref, c_ref, ve_ref, vc_ref, we_ref, wc_ref, out_ref):
    e = e_ref[...]                                    # (TB, D) f32
    c = c_ref[...]                                    # (TB, C) f32

    # bf16 MXU operands, f32 accumulation.
    e_mx = e.astype(jnp.bfloat16)
    c_mx = c.astype(jnp.bfloat16)

    # concat @ V  ==  e @ V_e + c @ V_c   (no in-kernel lane concat)
    g_logit = (jnp.dot(e_mx, ve_ref[...], preferred_element_type=jnp.float32)
               + jnp.dot(c_mx, vc_ref[...], preferred_element_type=jnp.float32))
    pre_act = (jnp.dot(e_mx, we_ref[...], preferred_element_type=jnp.float32)
               + jnp.dot(c_mx, wc_ref[...], preferred_element_type=jnp.float32))

    g = jax.nn.sigmoid(g_logit)                       # EUP, f32
    e_tilde = jnp.maximum(pre_act, 0.0)               # ReLU on VPU, f32
    e_upd = e + e_tilde * g                           # gated residual

    # Row-wise L2 normalize == F.normalize(p=2, dim=0) applied per example.
    norm = jnp.sqrt(jnp.sum(e_upd * e_upd, axis=-1, keepdims=True))
    out_ref[...] = e_upd / jnp.maximum(norm, 1e-12)


def pack_params(V, W, embedding_dim):
    """One-time weight packing: split along the concat axis and cast to bf16.

    V, W: (D + C, D) as in the PyTorch module (so V.T @ concat == concat @ V).
    Returns (V_e, V_c, W_e, W_c) ready for the kernel; do this once, not per
    forward call.
    """
    d = embedding_dim
    V = jnp.asarray(V, jnp.float32)
    W = jnp.asarray(W, jnp.float32)
    return (V[:d].astype(jnp.bfloat16), V[d:].astype(jnp.bfloat16),
            W[:d].astype(jnp.bfloat16), W[d:].astype(jnp.bfloat16))


@functools.partial(jax.jit, static_argnames=("block_b",))
def class_update_forward(e, class_indicator, packed, *, block_b=128):
    """Batched ClassUpdateLayer forward.

    Args:
      e:               (B, D) f32 individual embeddings.
      class_indicator: (B, C) f32 binary class-membership vectors.
      packed:          output of pack_params (V_e, V_c, W_e, W_c), bf16.
      block_b:         batch tile (128 works on all generations; 256 is a good
                       choice on v6e/v7x for larger batches).

    Returns:
      (B, D) f32 updated, L2-normalized embeddings.
    """
    ve, vc, we, wc = packed
    B, D = e.shape
    C = class_indicator.shape[1]
    tb = min(block_b, B)
    assert B % tb == 0, "batch must be a multiple of the batch tile"

    grid_spec = pltpu.PrefetchScalarGridSpec(
        num_scalar_prefetch=0,
        grid=(B // tb,),
        in_specs=[
            pl.BlockSpec((tb, D), lambda i: (i, 0)),   # e_i tile
            pl.BlockSpec((tb, C), lambda i: (i, 0)),   # class-indicator tile
            pl.BlockSpec((D, D), lambda i: (0, 0)),    # V_e (VMEM-resident)
            pl.BlockSpec((C, D), lambda i: (0, 0)),    # V_c (VMEM-resident)
            pl.BlockSpec((D, D), lambda i: (0, 0)),    # W_e (VMEM-resident)
            pl.BlockSpec((C, D), lambda i: (0, 0)),    # W_c (VMEM-resident)
        ],
        out_specs=pl.BlockSpec((tb, D), lambda i: (i, 0)),
    )

    return pl.pallas_call(
        _class_update_kernel,
        out_shape=jax.ShapeDtypeStruct((B, D), jnp.float32),
        grid_spec=grid_spec,
        compiler_params=pltpu.CompilerParams(
            dimension_semantics=("parallel",)),
    )(e.astype(jnp.float32), class_indicator.astype(jnp.float32),
      ve, vc, we, wc)


if __name__ == "__main__":
    embedding_dim = 128      # multiple of 128 -> lane-dense output tile
    num_classes = 32
    batch = 256

    key = jax.random.PRNGKey(0)
    k_e, k_c, k_v, k_w = jax.random.split(key, 4)

    e = jax.random.normal(k_e, (batch, embedding_dim), dtype=jnp.float32)
    class_indicator = (jax.random.uniform(k_c, (batch, num_classes)) < 0.3
                       ).astype(jnp.float32)

    # Parameters exactly as in the PyTorch module: randn((D + C, D)).
    V = jax.random.normal(k_v, (embedding_dim + num_classes, embedding_dim),
                          dtype=jnp.float32)
    W = jax.random.normal(k_w, (embedding_dim + num_classes, embedding_dim),
                          dtype=jnp.float32)
    packed = pack_params(V, W, embedding_dim)

    out = class_update_forward(e, class_indicator, packed)
    jax.block_until_ready(out)

    # ---- reference checks ---------------------------------------------------
    concat = jnp.concatenate([e, class_indicator], axis=1)          # (B, D+C)

    # (1) Tight check against the same bf16-operand / f32-accumulate math.
    concat_bf = concat.astype(jnp.bfloat16)
    g_logit = jnp.dot(concat_bf, V.astype(jnp.bfloat16),
                      preferred_element_type=jnp.float32)
    pre = jnp.dot(concat_bf, W.astype(jnp.bfloat16),
                  preferred_element_type=jnp.float32)
    e_upd = e + jnp.maximum(pre, 0.0) * jax.nn.sigmoid(g_logit)
    ref_bf16 = e_upd / jnp.maximum(
        jnp.linalg.norm(e_upd, axis=-1, keepdims=True), 1e-12)
    assert jnp.allclose(out, ref_bf16, atol=1e-3), (
        "bf16-matched mismatch", float(jnp.max(jnp.abs(out - ref_bf16))))

    # (2) Fidelity check against the pure-f32 PyTorch-equivalent math.
    g_f32 = jax.nn.sigmoid(concat @ V)
    e_tilde_f32 = jnp.maximum(concat @ W, 0.0)
    e_upd_f32 = e + e_tilde_f32 * g_f32
    ref_f32 = e_upd_f32 / jnp.maximum(
        jnp.linalg.norm(e_upd_f32, axis=-1, keepdims=True), 1e-12)
    assert jnp.allclose(out, ref_f32, atol=5e-2), (
        "f32-reference mismatch", float(jnp.max(jnp.abs(out - ref_f32))))

    print("KERNEL_OK")
</pallas_src>

<mosaic_0001>
module attributes {stable_mosaic.version = 11 : i64} {
  func.func @_class_update_kernel(%arg0: i32, %arg1: memref<128x128xf32, #tpu.memory_space<vmem>>, %arg2: memref<128x32xf32, #tpu.memory_space<vmem>>, %arg3: memref<128x128xbf16, #tpu.memory_space<vmem>>, %arg4: memref<32x128xbf16, #tpu.memory_space<vmem>>, %arg5: memref<128x128xbf16, #tpu.memory_space<vmem>>, %arg6: memref<32x128xbf16, #tpu.memory_space<vmem>>, %arg7: memref<128x128xf32, #tpu.memory_space<vmem>>) attributes {dimension_semantics = [#tpu.dimension_semantics<parallel>], iteration_bounds = array<i64: 2>, scalar_prefetch = 0 : i64, scratch_operands = 0 : i64, tpu.core_type = #tpu.core_type<tc>, window_params = [{transform_indices = @transform_0, window_bounds = array<i64: 128, 128>}, {transform_indices = @transform_1, window_bounds = array<i64: 128, 32>}, {pipeline_mode = #tpu.pipeline_mode<synchronous>, transform_indices = @transform_2, window_bounds = array<i64: 128, 128>}, {pipeline_mode = #tpu.pipeline_mode<synchronous>, transform_indices = @transform_3, window_bounds = array<i64: 32, 128>}, {pipeline_mode = #tpu.pipeline_mode<synchronous>, transform_indices = @transform_4, window_bounds = array<i64: 128, 128>}, {pipeline_mode = #tpu.pipeline_mode<synchronous>, transform_indices = @transform_5, window_bounds = array<i64: 32, 128>}, {transform_indices = @transform_6, window_bounds = array<i64: 128, 128>}]} {
    %c0 = arith.constant 0 : index
    %c0_0 = arith.constant 0 : index
    %0 = vector.load %arg1[%c0, %c0_0] : memref<128x128xf32, #tpu.memory_space<vmem>>, vector<128x128xf32>
    %c0_1 = arith.constant 0 : index
    %c0_2 = arith.constant 0 : index
    %1 = vector.load %arg2[%c0_1, %c0_2] : memref<128x32xf32, #tpu.memory_space<vmem>>, vector<128x32xf32>
    %2 = arith.truncf %0 : vector<128x128xf32> to vector<128x128xbf16>
    %3 = arith.truncf %1 : vector<128x32xf32> to vector<128x32xbf16>
    %c0_3 = arith.constant 0 : index
    %c0_4 = arith.constant 0 : index
    %4 = vector.load %arg3[%c0_3, %c0_4] : memref<128x128xbf16, #tpu.memory_space<vmem>>, vector<128x128xbf16>
    %cst = arith.constant dense<0.000000e+00> : vector<128x128xf32>
    %5 = tpu.matmul %2, %4, %cst {dimension_numbers = #tpu.dot_dimension_numbers<[1], [0], [0], [1], [0, 0, 1, 1], [], []>} : vector<128x128xbf16>, vector<128x128xbf16>, vector<128x128xf32> -> vector<128x128xf32>
    %c0_5 = arith.constant 0 : index
    %c0_6 = arith.constant 0 : index
    %6 = vector.load %arg4[%c0_5, %c0_6] : memref<32x128xbf16, #tpu.memory_space<vmem>>, vector<32x128xbf16>
    %cst_7 = arith.constant dense<0.000000e+00> : vector<128x128xf32>
    %7 = tpu.matmul %3, %6, %cst_7 {dimension_numbers = #tpu.dot_dimension_numbers<[1], [0], [0], [1], [0, 0, 1, 1], [], []>} : vector<128x32xbf16>, vector<32x128xbf16>, vector<128x128xf32> -> vector<128x128xf32>
    %8 = arith.addf %5, %7 : vector<128x128xf32>
    %c0_8 = arith.constant 0 : index
    %c0_9 = arith.constant 0 : index
    %9 = vector.load %arg5[%c0_8, %c0_9] : memref<128x128xbf16, #tpu.memory_space<vmem>>, vector<128x128xbf16>
    %cst_10 = arith.constant dense<0.000000e+00> : vector<128x128xf32>
    %10 = tpu.matmul %2, %9, %cst_10 {dimension_numbers = #tpu.dot_dimension_numbers<[1], [0], [0], [1], [0, 0, 1, 1], [], []>} : vector<128x128xbf16>, vector<128x128xbf16>, vector<128x128xf32> -> vector<128x128xf32>
    %c0_11 = arith.constant 0 : index
    %c0_12 = arith.constant 0 : index
    %11 = vector.load %arg6[%c0_11, %c0_12] : memref<32x128xbf16, #tpu.memory_space<vmem>>, vector<32x128xbf16>
    %cst_13 = arith.constant dense<0.000000e+00> : vector<128x128xf32>
    %12 = tpu.matmul %3, %11, %cst_13 {dimension_numbers = #tpu.dot_dimension_numbers<[1], [0], [0], [1], [0, 0, 1, 1], [], []>} : vector<128x32xbf16>, vector<32x128xbf16>, vector<128x128xf32> -> vector<128x128xf32>
    %13 = arith.addf %10, %12 : vector<128x128xf32>
    %14 = arith.negf %8 : vector<128x128xf32>
    %15 = math.exp %14 : vector<128x128xf32>
    %cst_14 = arith.constant 1.000000e+00 : f32
    %16 = vector.broadcast %cst_14 : f32 to vector<128x128xf32>
    %17 = arith.addf %16, %15 : vector<128x128xf32>
    %18 = arith.divf %16, %17 : vector<128x128xf32>
    %cst_15 = arith.constant 0.000000e+00 : f32
    %19 = vector.broadcast %cst_15 : f32 to vector<128x128xf32>
    %20 = arith.maximumf %13, %19 : vector<128x128xf32>
    %21 = arith.mulf %20, %18 : vector<128x128xf32>
    %22 = arith.addf %0, %21 : vector<128x128xf32>
    %23 = arith.mulf %22, %22 : vector<128x128xf32>
    %cst_16 = arith.constant dense<0.000000e+00> : vector<128xf32>
    %24 = vector.multi_reduction <add>, %23, %cst_16 [1] : vector<128x128xf32> to vector<128xf32>
    %25 = vector.shape_cast %24 : vector<128xf32> to vector<128x1xf32>
    %26 = math.sqrt %25 : vector<128x1xf32>
    %cst_17 = arith.constant 9.99999996E-13 : f32
    %27 = vector.broadcast %cst_17 : f32 to vector<128x1xf32>
    %28 = arith.maximumf %26, %27 : vector<128x1xf32>
    %29 = vector.broadcast %28 : vector<128x1xf32> to vector<128x128xf32>
    %30 = arith.divf %22, %29 : vector<128x128xf32>
    %c0_18 = arith.constant 0 : index
    %c0_19 = arith.constant 0 : index
    %31 = vector.load %arg7[%c0_18, %c0_19] : memref<128x128xf32, #tpu.memory_space<vmem>>, vector<128x128xf32>
    tpu.vector_store %arg7[%c0_18, %c0_19], %30 {strides = array<i32>} : memref<128x128xf32, #tpu.memory_space<vmem>>, vector<128x128xf32>,
    return
  }
  func.func @transform_0(%arg0: i32) -> (i32, i32) {
    %c0_i32 = arith.constant 0 : i32
    %c0_i32_0 = arith.constant 0 : i32
    return %arg0, %c0_i32 : i32, i32
  }
  func.func @transform_1(%arg0: i32) -> (i32, i32) {
    %c0_i32 = arith.constant 0 : i32
    %c0_i32_0 = arith.constant 0 : i32
    return %arg0, %c0_i32 : i32, i32
  }
  func.func @transform_2(%arg0: i32) -> (i32, i32) {
    %c0_i32 = arith.constant 0 : i32
    %c0_i32_0 = arith.constant 0 : i32
    %c0_i32_1 = arith.constant 0 : i32
    return %c0_i32, %c0_i32_0 : i32, i32
  }
  func.func @transform_3(%arg0: i32) -> (i32, i32) {
    %c0_i32 = arith.constant 0 : i32
    %c0_i32_0 = arith.constant 0 : i32
    %c0_i32_1 = arith.constant 0 : i32
    return %c0_i32, %c0_i32_0 : i32, i32
  }
  func.func @transform_4(%arg0: i32) -> (i32, i32) {
    %c0_i32 = arith.constant 0 : i32
    %c0_i32_0 = arith.constant 0 : i32
    %c0_i32_1 = arith.constant 0 : i32
    return %c0_i32, %c0_i32_0 : i32, i32
  }
  func.func @transform_5(%arg0: i32) -> (i32, i32) {
    %c0_i32 = arith.constant 0 : i32
    %c0_i32_0 = arith.constant 0 : i32
    %c0_i32_1 = arith.constant 0 : i32
    return %c0_i32, %c0_i32_0 : i32, i32
  }
  func.func @transform_6(%arg0: i32) -> (i32, i32) {
    %c0_i32 = arith.constant 0 : i32
    %c0_i32_0 = arith.constant 0 : i32
    return %arg0, %c0_i32 : i32, i32
  }
}

</mosaic_0001>

<llo_original>
// kernel: class_update_forward.1
$region0: #{class_update_forward.1}
  #allocation0 [shape = 'u32[]', space=smem, size = 0x4, offset = 0x4, fixed_abs, tag = 'smem constant byte address 0x4 - core index']
  #allocation1 [shape = 'u32[144,128]{1,0:T(1,128)}', space=vmem, size = 0x12000, scoped, tag = 'internal scratch']
  %s0 = inlined_call_operand.vmem [shape: f32[256,128], index: 0, kind: input, shape index: {}]
  %s1 = inlined_call_operand.vmem [shape: f32[256,32], index: 1, kind: input, shape index: {}]
  %s2 = inlined_call_operand.vmem [shape: bf16[128,128], index: 2, kind: input, shape index: {}]
  %s3 = inlined_call_operand.hbm [shape: bf16[32,128], index: 3, kind: input, shape index: {}]
  %s4 = inlined_call_operand.hbm [shape: bf16[128,128], index: 4, kind: input, shape index: {}]
  %s5 = inlined_call_operand.hbm [shape: bf16[32,128], index: 5, kind: input, shape index: {}]
  %s6 = inlined_call_operand.hbm [shape: f32[256,128], index: 6, kind: output, shape index: {}]
  %s7 = sld [smem:[#allocation0]]
  $region69: #{class_update_forward.1} parent=0
    _
  %s9 = ssub.s32 1, %s7
  %s10 = scalar_select 0, %s9, %s7
  $region1: #{class_update_forward.1} parent=0
    #allocation2 [shape = 'u8[8192]{0}', space=vmem, size = 0x2000, scoped, tag = 'input window, operand 3, single buffered']
    #allocation3 [shape = 's32[2]{0}', space=sflag, size = 0x8, scoped, tag = 'scoped memory for class_update_forward.1']
    #allocation4 [shape = 's32[2]{0}', space=sflag, size = 0x8, scoped, tag = 'scoped memory for class_update_forward.1']
    #allocation5 [shape = 'u8[32768]{0}', space=vmem, size = 0x8000, scoped, tag = 'input window, operand 4, single buffered']
    #allocation6 [shape = 's32[1]{0}', space=sflag, size = 0x4, scoped, tag = 'scoped memory for class_update_forward.1']
    #allocation7 [shape = 'u8[8192]{0}', space=vmem, size = 0x2000, scoped, tag = 'input window, operand 5, single buffered']
    #allocation8 [shape = 'u8[131072]{0}', space=vmem, size = 0x20000, scoped, tag = 'output window, operand 0']
    %11 = vsyncpa [#allocation3], 0
    %12 = vsyncpa [#allocation6], 0
    %13 = vsyncpa [#allocation4], 0
    %s14 = scalar_lea.sflag [#allocation4], 1
    %15 = vsyncpa %s14, 0
    loop: start=0, step=1, limit=4
    $region2: #{class_update_forward.1} parent=1 // loop_pre_header
      _
    $region3: #{class_update_forward.1} parent=1 // loop_header
      %s17 = sphi 0, %s21
      %p18 = scmp.ge.s32.totalorder %s17, 4
      %s27 = sphi 0, %s29
      %s30 = sphi 0, %s27
      %s31 = sphi 0, %s30
      %s47 = sphi 0, %s31
      %s53 = sphi 0, %s55
      %s56 = sphi 0, %s53
      %s57 = sphi 0, %s56
      %s73 = sphi 0, %s57
      %s77 = sphi 0, %s77
      %s79 = sphi 0, %s77
      %s80 = sphi 0, %s79
      %s94 = sphi 0, %s80
      %s98 = sphi 0, %s98
      %s100 = sphi 0, %s98
      %s101 = sphi 0, %s100
      %s115 = sphi 0, %s101
      %s119 = sphi 0, %s119
      %s121 = sphi 0, %s119
      %s122 = sphi 0, %s121
      %s136 = sphi 0, %s122
      %s140 = sphi 0, %s140
      %s142 = sphi 0, %s140
      %s143 = sphi 0, %s142
      %s157 = sphi 0, %s143
      %s163 = sphi 0, %s165
      %s166 = sphi 0, %s163
      %s167 = sphi 0, %s166
      %s183 = sphi 0, %s167
    $region4: #{class_update_forward.1} parent=1 // loop_header_branch
      %20 = sbr.rel (%p18) target = $region8
    $region5: #{class_update_forward.1} parent=1 // loop_body
      %s22 = ssub.s32 %s17, 1
      %s23 = ssub.s32 %s17, 2
      %s24 = sadd.s32 %s17, 1
      %s25 = ssub.s32 %s17, %s24
      %p26 = scmp.eq.s32.totalorder %s25, 0
      %s28 = sadd.s32 %s27, 1
      %s29 = scalar_select %p26, %s27, %s28
      %p32 = pneg %p26
      %p33 = scmp.eq.s32.totalorder %s17, 1
      %p34 = por %p32, %p33
      %p35 = scmp.ne.s32.totalorder %s27, %s30
      %p36 = scmp.eq.s32.totalorder %s17, 0
      %p37 = por %p35, %p36
      %p38 = scmp.ne.s32.totalorder %s27, %s30
      %p39 = scmp.eq.s32.totalorder %s22, 1
      %p40 = por %p38, %p39
      %p41 = scmp.ne.s32.totalorder %s30, %s31
      %p42 = scmp.eq.s32.totalorder %s22, 0
      %p43 = por %p41, %p42
      %p44 = scmp.ne.s32.totalorder %s30, %s31
      %p45 = scmp.eq.s32.totalorder %s23, 1
      %p46 = por %p44, %p45
      %p48 = scmp.ne.s32.totalorder %s31, %s47
      %p49 = scmp.eq.s32.totalorder %s23, 0
      %p50 = por %p48, %p49
      %s51 = ssub.s32 %s17, %s24
      %p52 = scmp.eq.s32.totalorder %s51, 0
      %s54 = sadd.s32 %s53, 1
      %s55 = scalar_select %p52, %s53, %s54
      %p58 = pneg %p52
      %p59 = scmp.eq.s32.totalorder %s17, 1
      %p60 = por %p58, %p59
      %p61 = scmp.ne.s32.totalorder %s53, %s56
      %p62 = scmp.eq.s32.totalorder %s17, 0
      %p63 = por %p61, %p62
      %p64 = scmp.ne.s32.totalorder %s53, %s56
      %p65 = scmp.eq.s32.totalorder %s22, 1
      %p66 = por %p64, %p65
      %p67 = scmp.ne.s32.totalorder %s56, %s57
      %p68 = scmp.eq.s32.totalorder %s22, 0
      %p69 = por %p67, %p68
      %p70 = scmp.ne.s32.totalorder %s56, %s57
      %p71 = scmp.eq.s32.totalorder %s23, 1
      %p72 = por %p70, %p71
      %p74 = scmp.ne.s32.totalorder %s57, %s73
      %p75 = scmp.eq.s32.totalorder %s23, 0
      %p76 = por %p74, %p75
      %s78 = sadd.s32 %s77, 1
      %p81 = scmp.eq.s32.totalorder %s17, 1
      %p82 = scmp.ne.s32.totalorder %s77, %s79
      %p83 = scmp.eq.s32.totalorder %s17, 0
      %p84 = por %p82, %p83
      %p85 = scmp.ne.s32.totalorder %s77, %s79
      %p86 = scmp.eq.s32.totalorder %s22, 1
      %p87 = por %p85, %p86
      %p88 = scmp.ne.s32.totalorder %s79, %s80
      %p89 = scmp.eq.s32.totalorder %s22, 0
      %p90 = por %p88, %p89
      %p91 = scmp.ne.s32.totalorder %s79, %s80
      %p92 = scmp.eq.s32.totalorder %s23, 1
      %p93 = por %p91, %p92
      %p95 = scmp.ne.s32.totalorder %s80, %s94
      %p96 = scmp.eq.s32.totalorder %s23, 0
      %p97 = por %p95, %p96
      %s99 = sadd.s32 %s98, 1
      %p102 = scmp.eq.s32.totalorder %s17, 1
      %p103 = scmp.ne.s32.totalorder %s98, %s100
      %p104 = scmp.eq.s32.totalorder %s17, 0
      %p105 = por %p103, %p104
      %p106 = scmp.ne.s32.totalorder %s98, %s100
      %p107 = scmp.eq.s32.totalorder %s22, 1
      %p108 = por %p106, %p107
      %p109 = scmp.ne.s32.totalorder %s100, %s101
      %p110 = scmp.eq.s32.totalorder %s22, 0
      %p111 = por %p109, %p110
      %p112 = scmp.ne.s32.totalorder %s100, %s101
      %p113 = scmp.eq.s32.totalorder %s23, 1
      %p114 = por %p112, %p113
      %p116 = scmp.ne.s32.totalorder %s101, %s115
      %p117 = scmp.eq.s32.totalorder %s23, 0
      %p118 = por %p116, %p117
      %s120 = sadd.s32 %s119, 1
      %p123 = scmp.eq.s32.totalorder %s17, 1
      %p124 = scmp.ne.s32.totalorder %s119, %s121
      %p125 = scmp.eq.s32.totalorder %s17, 0
      %p126 = por %p124, %p125
      %p127 = scmp.ne.s32.totalorder %s119, %s121
      %p128 = scmp.eq.s32.totalorder %s22, 1
      %p129 = por %p127, %p128
      %p130 = scmp.ne.s32.totalorder %s121, %s122
      %p131 = scmp.eq.s32.totalorder %s22, 0
      %p132 = por %p130, %p131
      %p133 = scmp.ne.s32.totalorder %s121, %s122
      %p134 = scmp.eq.s32.totalorder %s23, 1
      %p135 = por %p133, %p134
      %p137 = scmp.ne.s32.totalorder %s122, %s136
      %p138 = scmp.eq.s32.totalorder %s23, 0
      %p139 = por %p137, %p138
      %s141 = sadd.s32 %s140, 1
      %p144 = scmp.eq.s32.totalorder %s17, 1
      %p145 = scmp.ne.s32.totalorder %s140, %s142
      %p146 = scmp.eq.s32.totalorder %s17, 0
      %p147 = por %p145, %p146
      %p148 = scmp.ne.s32.totalorder %s140, %s142
      %p149 = scmp.eq.s32.totalorder %s22, 1
      %p150 = por %p148, %p149
      %p151 = scmp.ne.s32.totalorder %s142, %s143
      %p152 = scmp.eq.s32.totalorder %s22, 0
      %p153 = por %p151, %p152
      %p154 = scmp.ne.s32.totalorder %s142, %s143
      %p155 = scmp.eq.s32.totalorder %s23, 1
      %p156 = por %p154, %p155
      %p158 = scmp.ne.s32.totalorder %s143, %s157
      %p159 = scmp.eq.s32.totalorder %s23, 0
      %p160 = por %p158, %p159
      %s161 = ssub.s32 %s17, %s24
      %p162 = scmp.eq.s32.totalorder %s161, 0
      %s164 = sadd.s32 %s163, 1
      %s165 = scalar_select %p162, %s163, %s164
      %p168 = pneg %p162
      %p169 = scmp.eq.s32.totalorder %s17, 1
      %p170 = por %p168, %p169
      %p171 = scmp.ne.s32.totalorder %s163, %s166
      %p172 = scmp.eq.s32.totalorder %s17, 0
      %p173 = por %p171, %p172
      %p174 = scmp.ne.s32.totalorder %s163, %s166
      %p175 = scmp.eq.s32.totalorder %s22, 1
      %p176 = por %p174, %p175
      %p177 = scmp.ne.s32.totalorder %s166, %s167
      %p178 = scmp.eq.s32.totalorder %s22, 0
      %p179 = por %p177, %p178
      %p180 = scmp.ne.s32.totalorder %s166, %s167
      %p181 = scmp.eq.s32.totalorder %s23, 1
      %p182 = por %p180, %p181
      %p184 = scmp.ne.s32.totalorder %s167, %s183
      %p185 = scmp.eq.s32.totalorder %s23, 0
      %p186 = por %p184, %p185
      %p187 = scmp.le.s32.totalorder 1, %s17
      %p188 = scmp.lt.s32.totalorder %s17, 3
      %p189 = pnand %p187, %p188
      %p190 = pneg %p189
      // Predicated region
      $region9: #{class_update_forward.1} parent=5 // pred_check
        _
      $region10: #{class_update_forward.1} parent=5 // pred_check_branch
        %192 = sbr.rel (%p189) target = $region12
      $region11: #{class_update_forward.1} parent=5 // pred_region
        %s193 = ssub.s32 %s17, 1
        // Predicated region
        $region13: #{class_update_forward.1} parent=11 // pred_check
          %p194 = pneg %p90
        $region14: #{class_update_forward.1} parent=11 // pred_check_branch
          %196 = sbr.rel (%p194) target = $region16
        $region15: #{class_update_forward.1} parent=11 // pred_region
          _
        $region16: #{class_update_forward.1} parent=11 // pred_fallthru
          _
        // Predicated region
        $region17: #{class_update_forward.1} parent=11 // pred_check
          %p197 = pneg %p111
        $region18: #{class_update_forward.1} parent=11 // pred_check_branch
          %199 = sbr.rel (%p197) target = $region20
        $region19: #{class_update_forward.1} parent=11 // pred_region
          %s201 = ssub.s32 256, 256
          %202 = vsyncadd [#allocation3], %s201
          %s203 = sshll.u32 [#allocation2], 4
          %s204 = int_to_ptr.vmem [resolvable:$true] %s203
          %209 = dma.hbm_to_vmem [thread:$0]  %s3, 256, %s204, [#allocation3], 64, 64, 4
        $region20: #{class_update_forward.1} parent=11 // pred_fallthru
          _
        // Predicated region
        $region21: #{class_update_forward.1} parent=11 // pred_check
          %p210 = pneg %p132
        $region22: #{class_update_forward.1} parent=11 // pred_check_branch
          %212 = sbr.rel (%p210) target = $region24
        $region23: #{class_update_forward.1} parent=11 // pred_region
          %s214 = ssub.s32 1024, 1024
          %215 = vsyncadd [#allocation6], %s214
          %s216 = sshll.u32 [#allocation5], 4
          %s217 = int_to_ptr.vmem [resolvable:$true] %s216
          %222 = dma.hbm_to_vmem [thread:$0]  %s4, 1024, %s217, [#allocation6], 64, 64, 4
        $region24: #{class_update_forward.1} parent=11 // pred_fallthru
          _
        // Predicated region
        $region25: #{class_update_forward.1} parent=11 // pred_check
          %p223 = pneg %p153
        $region26: #{class_update_forward.1} parent=11 // pred_check_branch
          %225 = sbr.rel (%p223) target = $region28
        $region27: #{class_update_forward.1} parent=11 // pred_region
          %s227 = ssub.s32 256, 256
          %228 = vsyncadd [#allocation6], %s227
          %s229 = sshll.u32 [#allocation7], 4
          %s230 = int_to_ptr.vmem [resolvable:$true] %s229
          %235 = dma.hbm_to_vmem [thread:$0]  %s5, 256, %s230, [#allocation6], 64, 64, 4
        $region28: #{class_update_forward.1} parent=11 // pred_fallthru
          _
      $region12: #{class_update_forward.1} parent=5 // pred_fallthru
        _
      %p236 = scmp.lt.s32.totalorder %s17, 2
      // Predicated region
      $region29: #{class_update_forward.1} parent=5 // pred_check
        %p237 = pneg %p236
      $region30: #{class_update_forward.1} parent=5 // pred_check_branch
        %239 = sbr.rel (%p237) target = $region32
      $region31: #{class_update_forward.1} parent=5 // pred_region
        // Predicated region
        $region33: #{class_update_forward.1} parent=31 // pred_check
          %p240 = pneg %p37
        $region34: #{class_update_forward.1} parent=31 // pred_check_branch
          %242 = sbr.rel (%p240) target = $region36
        $region35: #{class_update_forward.1} parent=31 // pred_region
          %s243 = smul.u32 16, %s17
          %p244 = scmp.lt.s32.totalorder %s243, 31
          %s245 = scalar_select %p244, %s243, 31
          %s246 = smul.addr %s245, 8
          %s247 = scalar_lea.vmem %s0, %s246
          %s248 = smul.u32 16, %s17
        $region36: #{class_update_forward.1} parent=31 // pred_fallthru
          _
        // Predicated region
        $region37: #{class_update_forward.1} parent=31 // pred_check
          %p249 = pneg %p63
        $region38: #{class_update_forward.1} parent=31 // pred_check_branch
          %251 = sbr.rel (%p249) target = $region40
        $region39: #{class_update_forward.1} parent=31 // pred_region
          %s252 = smul.u32 16, %s17
          %p253 = scmp.lt.s32.totalorder %s252, 31
          %s254 = scalar_select %p253, %s252, 31
          %s255 = smul.addr %s254, 8
          %s256 = scalar_lea.vmem %s1, %s255
          %s257 = smul.u32 16, %s17
        $region40: #{class_update_forward.1} parent=31 // pred_fallthru
          _
      $region32: #{class_update_forward.1} parent=5 // pred_fallthru
        _
      %p258 = scmp.le.s32.totalorder 1, %s17
      %p259 = scmp.lt.s32.totalorder %s17, 3
      %p260 = pnand %p258, %p259
      %p261 = pneg %p260
      // Predicated region
      $region41: #{class_update_forward.1} parent=5 // pred_check
        _
      $region42: #{class_update_forward.1} parent=5 // pred_check_branch
        %263 = sbr.rel (%p260) target = $region44
      $region43: #{class_update_forward.1} parent=5 // pred_region
        %s264 = ssub.s32 %s17, 1
        // Predicated region
        $region45: #{class_update_forward.1} parent=43 // pred_check
          %p265 = pneg %p111
        $region46: #{class_update_forward.1} parent=43 // pred_check_branch
          %267 = sbr.rel (%p265) target = $region48
        $region47: #{class_update_forward.1} parent=43 // pred_region
          %268 = dma.done [#allocation3], 256
        $region48: #{class_update_forward.1} parent=43 // pred_fallthru
          _
        // Predicated region
        $region49: #{class_update_forward.1} parent=43 // pred_check
          %p269 = pneg %p132
        $region50: #{class_update_forward.1} parent=43 // pred_check_branch
          %271 = sbr.rel (%p269) target = $region52
        $region51: #{class_update_forward.1} parent=43 // pred_region
          %272 = dma.done [#allocation6], 1024
        $region52: #{class_update_forward.1} parent=43 // pred_fallthru
          _
        // Predicated region
        $region53: #{class_update_forward.1} parent=43 // pred_check
          %p273 = pneg %p153
        $region54: #{class_update_forward.1} parent=43 // pred_check_branch
          %275 = sbr.rel (%p273) target = $region56
        $region55: #{class_update_forward.1} parent=43 // pred_region
          %276 = dma.done [#allocation6], 256
        $region56: #{class_update_forward.1} parent=43 // pred_fallthru
          _
        %s277 = smul.u32 16, %s22
        %p278 = scmp.lt.s32.totalorder %s277, 31
        %s279 = scalar_select %p278, %s277, 31
        %s280 = smul.addr %s279, 8
        %s281 = scalar_lea.vmem %s0, %s280
        %p282 = pneg %p43
        %p283 = pneg %p40
        %s284 = smul.u32 16, %s22
        %p285 = scmp.lt.s32.totalorder %s284, 31
        %s286 = scalar_select %p285, %s284, 31
        %s287 = smul.addr %s286, 8
        %s288 = scalar_lea.vmem %s1, %s287
        %p289 = pneg %p69
        %p290 = pneg %p66
        %p291 = pneg %p90
        %p292 = pneg %p87
        %p293 = pneg %p111
        %p294 = pneg %p108
        %p295 = pneg %p132
        %p296 = pneg %p129
        %p297 = pneg %p153
        %p298 = pneg %p150
        %p299 = pneg %p179
        %p300 = pneg %p176
        %s301 = sand.u32 %s166, 1
        %s302 = scalar_lea.sflag [#allocation4], %s301
        %s303 = sand.u32 %s166, 1
        %s304 = smul.addr %s303, 128
        %s305 = scalar_lea.vmem [#allocation8], %s304
        %s306 = smul.u32 16, %s22
        %p307 = scmp.lt.s32.totalorder %s306, 31
        %s308 = scalar_select %p307, %s306, 31
        %s309 = smul.addr %s308, 8
        %s310 = scalar_lea.vmem %s0, %s309
        %s311 = smul.u32 16, %s22
        %s312 = smul.u32 16, %s22
        %p313 = scmp.lt.s32.totalorder %s312, 31
        %s314 = scalar_select %p313, %s312, 31
        %s315 = smul.addr %s314, 8
        %s316 = scalar_lea.vmem %s1, %s315
        %s317 = smul.u32 16, %s22
        %s318 = smul.u32 16, %s22
        %v320 = vld [vmem:[%s310] sm:$0xff]
        %v321 = vld [vmem:[%s310 + $0x8] sm:$0xff]
        %v322 = vld [vmem:[%s310 + $0x10] sm:$0xff]
        %v323 = vld [vmem:[%s310 + $0x18] sm:$0xff]
        %v324 = vld [vmem:[%s310 + $0x20] sm:$0xff]
        %v325 = vld [vmem:[%s310 + $0x28] sm:$0xff]
        %v326 = vld [vmem:[%s310 + $0x30] sm:$0xff]
        %v327 = vld [vmem:[%s310 + $0x38] sm:$0xff]
        %v328 = vld [vmem:[%s310 + $0x40] sm:$0xff]
        %v329 = vld [vmem:[%s310 + $0x48] sm:$0xff]
        %v330 = vld [vmem:[%s310 + $0x50] sm:$0xff]
        %v331 = vld [vmem:[%s310 + $0x58] sm:$0xff]
        %v332 = vld [vmem:[%s310 + $0x60] sm:$0xff]
        %v333 = vld [vmem:[%s310 + $0x68] sm:$0xff]
        %v334 = vld [vmem:[%s310 + $0x70] sm:$0xff]
        %v335 = vld [vmem:[%s310 + $0x78] sm:$0xff]
        %v336 = vld [vmem:[%s316] sm:$0xff]
        %v337 = vld [vmem:[%s316 + $0x8] sm:$0xff]
        %v338 = vld [vmem:[%s316 + $0x10] sm:$0xff]
        %v339 = vld [vmem:[%s316 + $0x18] sm:$0xff]
        %v340 = vld [vmem:[%s316 + $0x20] sm:$0xff]
        %v341 = vld [vmem:[%s316 + $0x28] sm:$0xff]
        %v342 = vld [vmem:[%s316 + $0x30] sm:$0xff]
        %v343 = vld [vmem:[%s316 + $0x38] sm:$0xff]
        %v344 = vld [vmem:[%s316 + $0x40] sm:$0xff]
        %v345 = vld [vmem:[%s316 + $0x48] sm:$0xff]
        %v346 = vld [vmem:[%s316 + $0x50] sm:$0xff]
        %v347 = vld [vmem:[%s316 + $0x58] sm:$0xff]
        %v348 = vld [vmem:[%s316 + $0x60] sm:$0xff]
        %v349 = vld [vmem:[%s316 + $0x68] sm:$0xff]
        %v350 = vld [vmem:[%s316 + $0x70] sm:$0xff]
        %v351 = vld [vmem:[%s316 + $0x78] sm:$0xff]
        %v352 = vpack.c.bf16 %v321, %v320
        %v353 = vpack.c.bf16 %v323, %v322
        %v354 = vpack.c.bf16 %v325, %v324
        %v355 = vpack.c.bf16 %v327, %v326
        %v356 = vpack.c.bf16 %v329, %v328
        %v357 = vpack.c.bf16 %v331, %v330
        %v358 = vpack.c.bf16 %v333, %v332
        %v359 = vpack.c.bf16 %v335, %v334
        %v360 = vpack.c.bf16 %v337, %v336
        %v361 = vpack.c.bf16 %v339, %v338
        %v362 = vpack.c.bf16 %v341, %v340
        %v363 = vpack.c.bf16 %v343, %v342
        %v364 = vpack.c.bf16 %v345, %v344
        %v365 = vpack.c.bf16 %v347, %v346
        %v366 = vpack.c.bf16 %v349, %v348
        %v367 = vpack.c.bf16 %v351, %v350
        %v368 = vld [vmem:[%s2] sm:$0xf]
        %v369 = vld [vmem:[%s2 + $0x4] sm:$0xf]
        %v370 = vld [vmem:[%s2 + $0x8] sm:$0xf]
        %v371 = vld [vmem:[%s2 + $0xc] sm:$0xf]
        %v372 = vld [vmem:[%s2 + $0x10] sm:$0xf]
        %v373 = vld [vmem:[%s2 + $0x14] sm:$0xf]
        %v374 = vld [vmem:[%s2 + $0x18] sm:$0xf]
        %v375 = vld [vmem:[%s2 + $0x1c] sm:$0xf]
        %v376 = vld [vmem:[%s2 + $0x20] sm:$0xf]
        %v377 = vld [vmem:[%s2 + $0x24] sm:$0xf]
        %v378 = vld [vmem:[%s2 + $0x28] sm:$0xf]
        %v379 = vld [vmem:[%s2 + $0x2c] sm:$0xf]
        %v380 = vld [vmem:[%s2 + $0x30] sm:$0xf]
        %v381 = vld [vmem:[%s2 + $0x34] sm:$0xf]
        %v382 = vld [vmem:[%s2 + $0x38] sm:$0xf]
        %v383 = vld [vmem:[%s2 + $0x3c] sm:$0xf]
        %v384 = vld [vmem:[#allocation2] sm:$0xf]
        %v385 = vld [vmem:[#allocation2 + $0x4] sm:$0xf]
        %v386 = vld [vmem:[#allocation2 + $0x8] sm:$0xf]
        %v387 = vld [vmem:[#allocation2 + $0xc] sm:$0xf]
        %v392 = vunpack.c.l.b16 %v384
        %v393 = vunpack.c.l.b16 %v385
        %v394 = vunpack.c.l.b16 %v386
        %v395 = vunpack.c.l.b16 %v387
        %v396 = vpack.c.b16 %v393, %v392
        %v397 = vpack.c.b16 %v395, %v394
        %vm400 = vcmask 261120
        %v402 = vsel %vm400, %v360, 0
        %v405 = vsel %vm400, %v361, 0
        %v408 = vsel %vm400, %v362, 0
        %v411 = vsel %vm400, %v363, 0
        %v414 = vsel %vm400, %v364, 0
        %v417 = vsel %vm400, %v365, 0
        %v420 = vsel %vm400, %v366, 0
        %v423 = vsel %vm400, %v367, 0
        %425 = vmatprep.subr.bf16.mxu0 0
        %426 = vmatpush1.bf16.msra.mxu0 0
        %427 = vmatprep.subr.bf16.mxu0 0
        %428 = vmatpush1.bf16.msra.mxu0 0
        %429 = vmatprep.subr.bf16.mxu0 0
        %430 = vmatpush1.bf16.msra.mxu0 0
        %431 = vmatprep.subr.bf16.mxu0 0
        %432 = vmatpush1.bf16.msra.mxu0 0
        %433 = vmatprep.subr.bf16.mxu0 0
        %434 = vmatpush1.bf16.msra.mxu0 0
        %435 = vmatprep.subr.bf16.mxu0 0
        %436 = vmatpush1.bf16.msra.mxu0 0
        %437 = vmatprep.subr.bf16.mxu0 0
        %438 = vmatpush1.bf16.msra.mxu0 %v397
        %439 = vmatprep.subr.bf16.mxu0 0
        %440 = vmatpush1.bf16.msra.mxu0 %v396
        %441 = vmatprep.subr.bf16.mxu0 0
        %442 = vmatpush2.bf16.msra.mxu0 0
        %443 = vmatprep.subr.bf16.mxu0 0
        %444 = vmatpush2.bf16.msra.mxu0 0
        %445 = vmatprep.subr.bf16.mxu0 0
        %446 = vmatpush2.bf16.msra.mxu0 0
        %447 = vmatprep.subr.bf16.mxu0 0
        %448 = vmatpush2.bf16.msra.mxu0 0
        %449 = vmatprep.subr.bf16.mxu0 0
        %450 = vmatpush2.bf16.msra.mxu0 0
        %451 = vmatprep.subr.bf16.mxu0 0
        %452 = vmatpush2.bf16.msra.mxu0 0
        %453 = vmatprep.subr.bf16.mxu0 0
        %454 = vmatpush2.bf16.msra.mxu0 0
        %455 = vmatprep.subr.bf16.mxu0 0
        %456 = vmatpush2.bf16.msra.mxu0 0
        %457 = vmatprep.mubr.bf16.mxu0 0
        %458 = vmatmul.mubr.bf16.gmra.mxu0 %v402
        %v459 = vpop.f32.mrf.mxu0
        %v460 = vadd.f32 0.0, %v459
        %v461 = vpop.f32.mrf.mxu0
        %v462 = vpop.f32.mrf.mxu0
        %v463 = vadd.f32 0.0, %v462
        %v464 = vpop.f32.mrf.mxu0
        %465 = vmatprep.mubr.bf16.mxu0 0
        %466 = vmatmul.mubr.bf16.gmra.mxu0 %v405
        %v467 = vpop.f32.mrf.mxu0
        %v468 = vadd.f32 0.0, %v467
        %v469 = vpop.f32.mrf.mxu0
        %v470 = vpop.f32.mrf.mxu0
        %v471 = vadd.f32 0.0, %v470
        %v472 = vpop.f32.mrf.mxu0
        %473 = vmatprep.mubr.bf16.mxu0 0
        %474 = vmatmul.mubr.bf16.gmra.mxu0 %v408
        %v475 = vpop.f32.mrf.mxu0
        %v476 = vadd.f32 0.0, %v475
        %v477 = vpop.f32.mrf.mxu0
        %v478 = vpop.f32.mrf.mxu0
        %v479 = vadd.f32 0.0, %v478
        %v480 = vpop.f32.mrf.mxu0
        %481 = vmatprep.mubr.bf16.mxu0 0
        %482 = vmatmul.mubr.bf16.gmra.mxu0 %v411
        %v483 = vpop.f32.mrf.mxu0
        %v484 = vadd.f32 0.0, %v483
        %v485 = vpop.f32.mrf.mxu0
        %v486 = vpop.f32.mrf.mxu0
        %v487 = vadd.f32 0.0, %v486
        %v488 = vpop.f32.mrf.mxu0
        %489 = vmatprep.mubr.bf16.mxu0 0
        %490 = vmatmul.mubr.bf16.gmra.mxu0 %v414
        %v491 = vpop.f32.mrf.mxu0
        %v492 = vadd.f32 0.0, %v491
        %v493 = vpop.f32.mrf.mxu0
        %v494 = vpop.f32.mrf.mxu0
        %v495 = vadd.f32 0.0, %v494
        %v496 = vpop.f32.mrf.mxu0
        %497 = vmatprep.mubr.bf16.mxu0 0
        %498 = vmatmul.mubr.bf16.gmra.mxu0 %v417
        %v499 = vpop.f32.mrf.mxu0
        %v500 = vadd.f32 0.0, %v499
        %v501 = vpop.f32.mrf.mxu0
        %v502 = vpop.f32.mrf.mxu0
        %v503 = vadd.f32 0.0, %v502
        %v504 = vpop.f32.mrf.mxu0
        %505 = vmatprep.mubr.bf16.mxu0 0
        %506 = vmatmul.mubr.bf16.gmra.mxu0 %v420
        %v507 = vpop.f32.mrf.mxu0
        %v508 = vadd.f32 0.0, %v507
        %v509 = vpop.f32.mrf.mxu0
        %v510 = vpop.f32.mrf.mxu0
        %v511 = vadd.f32 0.0, %v510
        %v512 = vpop.f32.mrf.mxu0
        %513 = vmatprep.mubr.bf16.mxu0 0
        %514 = vmatmul.mubr.bf16.gmra.mxu0 %v423
        %v515 = vpop.f32.mrf.mxu0
        %v516 = vadd.f32 0.0, %v515
        %v517 = vpop.f32.mrf.mxu0
        %v518 = vpop.f32.mrf.mxu0
        %v519 = vadd.f32 0.0, %v518
        %v520 = vpop.f32.mrf.mxu0
        %521 = vdwg.mxu0
        %v538 = vunpack.c.l.b16 %v368
        %v539 = vunpack.c.l.b16 %v369
        %v540 = vunpack.c.l.b16 %v370
        %v541 = vunpack.c.l.b16 %v371
        %v542 = vunpack.c.l.b16 %v372
        %v543 = vunpack.c.l.b16 %v373
        %v544 = vunpack.c.l.b16 %v374
        %v545 = vunpack.c.l.b16 %v375
        %v546 = vunpack.c.l.b16 %v376
        %v547 = vunpack.c.l.b16 %v377
        %v548 = vunpack.c.l.b16 %v378
        %v549 = vunpack.c.l.b16 %v379
        %v550 = vunpack.c.l.b16 %v380
        %v551 = vunpack.c.l.b16 %v381
        %v552 = vunpack.c.l.b16 %v382
        %v553 = vunpack.c.l.b16 %v383
        %v554 = vpack.c.b16 %v539, %v538
        %v555 = vpack.c.b16 %v541, %v540
        %v556 = vpack.c.b16 %v543, %v542
        %v557 = vpack.c.b16 %v545, %v544
        %v558 = vpack.c.b16 %v547, %v546
        %v559 = vpack.c.b16 %v549, %v548
        %v560 = vpack.c.b16 %v551, %v550
        %v561 = vpack.c.b16 %v553, %v552
        %570 = vmatprep.subr.bf16.mxu0 0
        %571 = vmatpush1.bf16.msra.mxu0 %v561
        %572 = vmatprep.subr.bf16.mxu0 0
        %573 = vmatpush1.bf16.msra.mxu0 %v560
        %574 = vmatprep.subr.bf16.mxu0 0
        %575 = vmatpush1.bf16.msra.mxu0 %v559
        %576 = vmatprep.subr.bf16.mxu0 0
        %577 = vmatpush1.bf16.msra.mxu0 %v558
        %578 = vmatprep.subr.bf16.mxu0 0
        %579 = vmatpush1.bf16.msra.mxu0 %v557
        %580 = vmatprep.subr.bf16.mxu0 0
        %581 = vmatpush1.bf16.msra.mxu0 %v556
        %582 = vmatprep.subr.bf16.mxu0 0
        %583 = vmatpush1.bf16.msra.mxu0 %v555
        %584 = vmatprep.subr.bf16.mxu0 0
        %585 = vmatpush1.bf16.msra.mxu0 %v554
        %586 = vmatprep.subr.bf16.mxu0 0
        %587 = vmatpush2.bf16.msra.mxu0 0
        %588 = vmatprep.subr.bf16.mxu0 0
        %589 = vmatpush2.bf16.msra.mxu0 0
        %590 = vmatprep.subr.bf16.mxu0 0
        %591 = vmatpush2.bf16.msra.mxu0 0
        %592 = vmatprep.subr.bf16.mxu0 0
        %593 = vmatpush2.bf16.msra.mxu0 0
        %594 = vmatprep.subr.bf16.mxu0 0
        %595 = vmatpush2.bf16.msra.mxu0 0
        %596 = vmatprep.subr.bf16.mxu0 0
        %597 = vmatpush2.bf16.msra.mxu0 0
        %598 = vmatprep.subr.bf16.mxu0 0
        %599 = vmatpush2.bf16.msra.mxu0 0
        %600 = vmatprep.subr.bf16.mxu0 0
        %601 = vmatpush2.bf16.msra.mxu0 0
        %602 = vmatprep.mubr.bf16.mxu0 0
        %603 = vmatmul.mubr.bf16.gmra.mxu0 %v352
        %v604 = vpop.f32.mrf.mxu0
        %v605 = vadd.f32 %v460, %v604
        %v606 = vpop.f32.mrf.mxu0
        %v607 = vpop.f32.mrf.mxu0
        %v608 = vadd.f32 %v463, %v607
        %v609 = vpop.f32.mrf.mxu0
        %610 = vmatprep.mubr.bf16.mxu0 0
        %611 = vmatmul.mubr.bf16.gmra.mxu0 %v353
        %v612 = vpop.f32.mrf.mxu0
        %v613 = vadd.f32 %v468, %v612
        %v614 = vpop.f32.mrf.mxu0
        %v615 = vpop.f32.mrf.mxu0
        %v616 = vadd.f32 %v471, %v615
        %v617 = vpop.f32.mrf.mxu0
        %618 = vmatprep.mubr.bf16.mxu0 0
        %619 = vmatmul.mubr.bf16.gmra.mxu0 %v354
        %v620 = vpop.f32.mrf.mxu0
        %v621 = vadd.f32 %v476, %v620
        %v622 = vpop.f32.mrf.mxu0
        %v623 = vpop.f32.mrf.mxu0
        %v624 = vadd.f32 %v479, %v623
        %v625 = vpop.f32.mrf.mxu0
        %626 = vmatprep.mubr.bf16.mxu0 0
        %627 = vmatmul.mubr.bf16.gmra.mxu0 %v355
        %v628 = vpop.f32.mrf.mxu0
        %v629 = vadd.f32 %v484, %v628
        %v630 = vpop.f32.mrf.mxu0
        %v631 = vpop.f32.mrf.mxu0
        %v632 = vadd.f32 %v487, %v631
        %v633 = vpop.f32.mrf.mxu0
        %634 = vmatprep.mubr.bf16.mxu0 0
        %635 = vmatmul.mubr.bf16.gmra.mxu0 %v356
        %v636 = vpop.f32.mrf.mxu0
        %v637 = vadd.f32 %v492, %v636
        %v638 = vpop.f32.mrf.mxu0
        %v639 = vpop.f32.mrf.mxu0
        %v640 = vadd.f32 %v495, %v639
        %v641 = vpop.f32.mrf.mxu0
        %642 = vmatprep.mubr.bf16.mxu0 0
        %643 = vmatmul.mubr.bf16.gmra.mxu0 %v357
        %v644 = vpop.f32.mrf.mxu0
        %v645 = vadd.f32 %v500, %v644
        %v646 = vpop.f32.mrf.mxu0
        %v647 = vpop.f32.mrf.mxu0
        %v648 = vadd.f32 %v503, %v647
        %v649 = vpop.f32.mrf.mxu0
        %650 = vmatprep.mubr.bf16.mxu0 0
        %651 = vmatmul.mubr.bf16.gmra.mxu0 %v358
        %v652 = vpop.f32.mrf.mxu0
        %v653 = vadd.f32 %v508, %v652
        %v654 = vpop.f32.mrf.mxu0
        %v655 = vpop.f32.mrf.mxu0
        %v656 = vadd.f32 %v511, %v655
        %v657 = vpop.f32.mrf.mxu0
        %658 = vmatprep.mubr.bf16.mxu0 0
        %659 = vmatmul.mubr.bf16.gmra.mxu0 %v359
        %v660 = vpop.f32.mrf.mxu0
        %v661 = vadd.f32 %v516, %v660
        %v662 = vpop.f32.mrf.mxu0
        %v663 = vpop.f32.mrf.mxu0
        %v664 = vadd.f32 %v519, %v663
        %v665 = vpop.f32.mrf.mxu0
        %666 = vdwg.mxu0
        %v667 = vld [vmem:[#allocation5] sm:$0xf]
        %v668 = vld [vmem:[#allocation5 + $0x4] sm:$0xf]
        %v669 = vld [vmem:[#allocation5 + $0x8] sm:$0xf]
        %v670 = vld [vmem:[#allocation5 + $0xc] sm:$0xf]
        %v671 = vld [vmem:[#allocation5 + $0x10] sm:$0xf]
        %v672 = vld [vmem:[#allocation5 + $0x14] sm:$0xf]
        %v673 = vld [vmem:[#allocation5 + $0x18] sm:$0xf]
        %v674 = vld [vmem:[#allocation5 + $0x1c] sm:$0xf]
        %v675 = vld [vmem:[#allocation5 + $0x20] sm:$0xf]
        %v676 = vld [vmem:[#allocation5 + $0x24] sm:$0xf]
        %v677 = vld [vmem:[#allocation5 + $0x28] sm:$0xf]
        %v678 = vld [vmem:[#allocation5 + $0x2c] sm:$0xf]
        %v679 = vld [vmem:[#allocation5 + $0x30] sm:$0xf]
        %v680 = vld [vmem:[#allocation5 + $0x34] sm:$0xf]
        %v681 = vld [vmem:[#allocation5 + $0x38] sm:$0xf]
        %v682 = vld [vmem:[#allocation5 + $0x3c] sm:$0xf]
        %v683 = vld [vmem:[#allocation7] sm:$0xf]
        %v684 = vld [vmem:[#allocation7 + $0x4] sm:$0xf]
        %v685 = vld [vmem:[#allocation7 + $0x8] sm:$0xf]
        %v686 = vld [vmem:[#allocation7 + $0xc] sm:$0xf]
        %v691 = vunpack.c.l.b16 %v683
        %v692 = vunpack.c.l.b16 %v684
        %v693 = vunpack.c.l.b16 %v685
        %v694 = vunpack.c.l.b16 %v686
        %v695 = vpack.c.b16 %v692, %v691
        %v696 = vpack.c.b16 %v694, %v693
        %699 = vmatprep.subr.bf16.mxu0 0
        %700 = vmatpush1.bf16.msra.mxu0 0
        %701 = vmatprep.subr.bf16.mxu0 0
        %702 = vmatpush1.bf16.msra.mxu0 0
        %703 = vmatprep.subr.bf16.mxu0 0
        %704 = vmatpush1.bf16.msra.mxu0 0
        %705 = vmatprep.subr.bf16.mxu0 0
        %706 = vmatpush1.bf16.msra.mxu0 0
        %707 = vmatprep.subr.bf16.mxu0 0
        %708 = vmatpush1.bf16.msra.mxu0 0
        %709 = vmatprep.subr.bf16.mxu0 0
        %710 = vmatpush1.bf16.msra.mxu0 0
        %711 = vmatprep.subr.bf16.mxu0 0
        %712 = vmatpush1.bf16.msra.mxu0 %v696
        %713 = vmatprep.subr.bf16.mxu0 0
        %714 = vmatpush1.bf16.msra.mxu0 %v695
        %715 = vmatprep.subr.bf16.mxu0 0
        %716 = vmatpush2.bf16.msra.mxu0 0
        %717 = vmatprep.subr.bf16.mxu0 0
        %718 = vmatpush2.bf16.msra.mxu0 0
        %719 = vmatprep.subr.bf16.mxu0 0
        %720 = vmatpush2.bf16.msra.mxu0 0
        %721 = vmatprep.subr.bf16.mxu0 0
        %722 = vmatpush2.bf16.msra.mxu0 0
        %723 = vmatprep.subr.bf16.mxu0 0
        %724 = vmatpush2.bf16.msra.mxu0 0
        %725 = vmatprep.subr.bf16.mxu0 0
        %726 = vmatpush2.bf16.msra.mxu0 0
        %727 = vmatprep.subr.bf16.mxu0 0
        %728 = vmatpush2.bf16.msra.mxu0 0
        %729 = vmatprep.subr.bf16.mxu0 0
        %730 = vmatpush2.bf16.msra.mxu0 0
        %731 = vmatprep.mubr.bf16.mxu0 0
        %732 = vmatmul.mubr.bf16.gmra.mxu0 %v402
        %v733 = vpop.f32.mrf.mxu0
        %v734 = vadd.f32 0.0, %v733
        %v735 = vpop.f32.mrf.mxu0
        %v736 = vpop.f32.mrf.mxu0
        %v737 = vadd.f32 0.0, %v736
        %v738 = vpop.f32.mrf.mxu0
        %739 = vmatprep.mubr.bf16.mxu0 0
        %740 = vmatmul.mubr.bf16.gmra.mxu0 %v405
        %v741 = vpop.f32.mrf.mxu0
        %v742 = vadd.f32 0.0, %v741
        %v743 = vpop.f32.mrf.mxu0
        %v744 = vpop.f32.mrf.mxu0
        %v745 = vadd.f32 0.0, %v744
        %v746 = vpop.f32.mrf.mxu0
        %747 = vmatprep.mubr.bf16.mxu0 0
        %748 = vmatmul.mubr.bf16.gmra.mxu0 %v408
        %v749 = vpop.f32.mrf.mxu0
        %v750 = vadd.f32 0.0, %v749
        %v751 = vpop.f32.mrf.mxu0
        %v752 = vpop.f32.mrf.mxu0
        %v753 = vadd.f32 0.0, %v752
        %v754 = vpop.f32.mrf.mxu0
        %755 = vmatprep.mubr.bf16.mxu0 0
        %756 = vmatmul.mubr.bf16.gmra.mxu0 %v411
        %v757 = vpop.f32.mrf.mxu0
        %v758 = vadd.f32 0.0, %v757
        %v759 = vpop.f32.mrf.mxu0
        %v760 = vpop.f32.mrf.mxu0
        %v761 = vadd.f32 0.0, %v760
        %v762 = vpop.f32.mrf.mxu0
        %763 = vmatprep.mubr.bf16.mxu0 0
        %764 = vmatmul.mubr.bf16.gmra.mxu0 %v414
        %v765 = vpop.f32.mrf.mxu0
        %v766 = vadd.f32 0.0, %v765
        %v767 = vpop.f32.mrf.mxu0
        %v768 = vpop.f32.mrf.mxu0
        %v769 = vadd.f32 0.0, %v768
        %v770 = vpop.f32.mrf.mxu0
        %771 = vmatprep.mubr.bf16.mxu0 0
        %772 = vmatmul.mubr.bf16.gmra.mxu0 %v417
        %v773 = vpop.f32.mrf.mxu0
        %v774 = vadd.f32 0.0, %v773
        %v775 = vpop.f32.mrf.mxu0
        %v776 = vpop.f32.mrf.mxu0
        %v777 = vadd.f32 0.0, %v776
        %v778 = vpop.f32.mrf.mxu0
        %779 = vmatprep.mubr.bf16.mxu0 0
        %780 = vmatmul.mubr.bf16.gmra.mxu0 %v420
        %v781 = vpop.f32.mrf.mxu0
        %v782 = vadd.f32 0.0, %v781
        %v783 = vpop.f32.mrf.mxu0
        %v784 = vpop.f32.mrf.mxu0
        %v785 = vadd.f32 0.0, %v784
        %v786 = vpop.f32.mrf.mxu0
        %787 = vmatprep.mubr.bf16.mxu0 0
        %788 = vmatmul.mubr.bf16.gmra.mxu0 %v423
        %v789 = vpop.f32.mrf.mxu0
        %v790 = vadd.f32 0.0, %v789
        %v791 = vpop.f32.mrf.mxu0
        %v792 = vpop.f32.mrf.mxu0
        %v793 = vadd.f32 0.0, %v792
        %v794 = vpop.f32.mrf.mxu0
        %795 = vdwg.mxu0
        %v812 = vunpack.c.l.b16 %v667
        %v813 = vunpack.c.l.b16 %v668
        %v814 = vunpack.c.l.b16 %v669
        %v815 = vunpack.c.l.b16 %v670
        %v816 = vunpack.c.l.b16 %v671
        %v817 = vunpack.c.l.b16 %v672
        %v818 = vunpack.c.l.b16 %v673
        %v819 = vunpack.c.l.b16 %v674
        %v820 = vunpack.c.l.b16 %v675
        %v821 = vunpack.c.l.b16 %v676
        %v822 = vunpack.c.l.b16 %v677
        %v823 = vunpack.c.l.b16 %v678
        %v824 = vunpack.c.l.b16 %v679
        %v825 = vunpack.c.l.b16 %v680
        %v826 = vunpack.c.l.b16 %v681
        %v827 = vunpack.c.l.b16 %v682
        %v828 = vpack.c.b16 %v813, %v812
        %v829 = vpack.c.b16 %v815, %v814
        %v830 = vpack.c.b16 %v817, %v816
        %v831 = vpack.c.b16 %v819, %v818
        %v832 = vpack.c.b16 %v821, %v820
        %v833 = vpack.c.b16 %v823, %v822
        %v834 = vpack.c.b16 %v825, %v824
        %v835 = vpack.c.b16 %v827, %v826
        %844 = vmatprep.subr.bf16.mxu0 0
        %845 = vmatpush1.bf16.msra.mxu0 %v835
        %846 = vmatprep.subr.bf16.mxu0 0
        %847 = vmatpush1.bf16.msra.mxu0 %v834
        %848 = vmatprep.subr.bf16.mxu0 0
        %849 = vmatpush1.bf16.msra.mxu0 %v833
        %850 = vmatprep.subr.bf16.mxu0 0
        %851 = vmatpush1.bf16.msra.mxu0 %v832
        %852 = vmatprep.subr.bf16.mxu0 0
        %853 = vmatpush1.bf16.msra.mxu0 %v831
        %854 = vmatprep.subr.bf16.mxu0 0
        %855 = vmatpush1.bf16.msra.mxu0 %v830
        %856 = vmatprep.subr.bf16.mxu0 0
        %857 = vmatpush1.bf16.msra.mxu0 %v829
        %858 = vmatprep.subr.bf16.mxu0 0
        %859 = vmatpush1.bf16.msra.mxu0 %v828
        %860 = vmatprep.subr.bf16.mxu0 0
        %861 = vmatpush2.bf16.msra.mxu0 0
        %862 = vmatprep.subr.bf16.mxu0 0
        %863 = vmatpush2.bf16.msra.mxu0 0
        %864 = vmatprep.subr.bf16.mxu0 0
        %865 = vmatpush2.bf16.msra.mxu0 0
        %866 = vmatprep.subr.bf16.mxu0 0
        %867 = vmatpush2.bf16.msra.mxu0 0
        %868 = vmatprep.subr.bf16.mxu0 0
        %869 = vmatpush2.bf16.msra.mxu0 0
        %870 = vmatprep.subr.bf16.mxu0 0
        %871 = vmatpush2.bf16.msra.mxu0 0
        %872 = vmatprep.subr.bf16.mxu0 0
        %873 = vmatpush2.bf16.msra.mxu0 0
        %874 = vmatprep.subr.bf16.mxu0 0
        %875 = vmatpush2.bf16.msra.mxu0 0
        %876 = vmatprep.mubr.bf16.mxu0 0
        %877 = vmatmul.mubr.bf16.gmra.mxu0 %v352
        %v878 = vpop.f32.mrf.mxu0
        %v879 = vadd.f32 %v734, %v878
        %v880 = vpop.f32.mrf.mxu0
        %v881 = vpop.f32.mrf.mxu0
        %v882 = vadd.f32 %v737, %v881
        %v883 = vpop.f32.mrf.mxu0
        %884 = vmatprep.mubr.bf16.mxu0 0
        %885 = vmatmul.mubr.bf16.gmra.mxu0 %v353
        %v886 = vpop.f32.mrf.mxu0
        %v887 = vadd.f32 %v742, %v886
        %v888 = vpop.f32.mrf.mxu0
        %v889 = vpop.f32.mrf.mxu0
        %v890 = vadd.f32 %v745, %v889
        %v891 = vpop.f32.mrf.mxu0
        %892 = vmatprep.mubr.bf16.mxu0 0
        %893 = vmatmul.mubr.bf16.gmra.mxu0 %v354
        %v894 = vpop.f32.mrf.mxu0
        %v895 = vadd.f32 %v750, %v894
        %v896 = vpop.f32.mrf.mxu0
        %v897 = vpop.f32.mrf.mxu0
        %v898 = vadd.f32 %v753, %v897
        %v899 = vpop.f32.mrf.mxu0
        %900 = vmatprep.mubr.bf16.mxu0 0
        %901 = vmatmul.mubr.bf16.gmra.mxu0 %v355
        %v902 = vpop.f32.mrf.mxu0
        %v903 = vadd.f32 %v758, %v902
        %v904 = vpop.f32.mrf.mxu0
        %v905 = vpop.f32.mrf.mxu0
        %v906 = vadd.f32 %v761, %v905
        %v907 = vpop.f32.mrf.mxu0
        %908 = vmatprep.mubr.bf16.mxu0 0
        %909 = vmatmul.mubr.bf16.gmra.mxu0 %v356
        %v910 = vpop.f32.mrf.mxu0
        %v911 = vadd.f32 %v766, %v910
        %v912 = vpop.f32.mrf.mxu0
        %v913 = vpop.f32.mrf.mxu0
        %v914 = vadd.f32 %v769, %v913
        %v915 = vpop.f32.mrf.mxu0
        %916 = vmatprep.mubr.bf16.mxu0 0
        %917 = vmatmul.mubr.bf16.gmra.mxu0 %v357
        %v918 = vpop.f32.mrf.mxu0
        %v919 = vadd.f32 %v774, %v918
        %v920 = vpop.f32.mrf.mxu0
        %v921 = vpop.f32.mrf.mxu0
        %v922 = vadd.f32 %v777, %v921
        %v923 = vpop.f32.mrf.mxu0
        %924 = vmatprep.mubr.bf16.mxu0 0
        %925 = vmatmul.mubr.bf16.gmra.mxu0 %v358
        %v926 = vpop.f32.mrf.mxu0
        %v927 = vadd.f32 %v782, %v926
        %v928 = vpop.f32.mrf.mxu0
        %v929 = vpop.f32.mrf.mxu0
        %v930 = vadd.f32 %v785, %v929
        %v931 = vpop.f32.mrf.mxu0
        %932 = vmatprep.mubr.bf16.mxu0 0
        %933 = vmatmul.mubr.bf16.gmra.mxu0 %v359
        %v934 = vpop.f32.mrf.mxu0
        %v935 = vadd.f32 %v790, %v934
        %v936 = vpop.f32.mrf.mxu0
        %v937 = vpop.f32.mrf.mxu0
        %v938 = vadd.f32 %v793, %v937
        %v939 = vpop.f32.mrf.mxu0
        %940 = vdwg.mxu0
        %v941 = vxor.u32 %v605, 2147483648
        %v942 = vxor.u32 %v608, 2147483648
        %v943 = vxor.u32 %v613, 2147483648
        %v944 = vxor.u32 %v616, 2147483648
        %v945 = vxor.u32 %v621, 2147483648
        %v946 = vxor.u32 %v624, 2147483648
        %v947 = vxor.u32 %v629, 2147483648
        %v948 = vxor.u32 %v632, 2147483648
        %v949 = vxor.u32 %v637, 2147483648
        %v950 = vxor.u32 %v640, 2147483648
        %v951 = vxor.u32 %v645, 2147483648
        %v952 = vxor.u32 %v648, 2147483648
        %v953 = vxor.u32 %v653, 2147483648
        %v954 = vxor.u32 %v656, 2147483648
        %v955 = vxor.u32 %v661, 2147483648
        %v956 = vxor.u32 %v664, 2147483648
        %v957 = vmul.f32 %v941, 1.442695
        %v958 = vpow.pop %v957
        %v959 = vmul.f32 %v942, 1.442695
        %v960 = vpow.pop %v959
        %v961 = vmul.f32 %v943, 1.442695
        %v962 = vpow.pop %v961
        %v963 = vmul.f32 %v944, 1.442695
        %v964 = vpow.pop %v963
        %v965 = vmul.f32 %v945, 1.442695
        %v966 = vpow.pop %v965
        %v967 = vmul.f32 %v946, 1.442695
        %v968 = vpow.pop %v967
        %v969 = vmul.f32 %v947, 1.442695
        %v970 = vpow.pop %v969
        %v971 = vmul.f32 %v948, 1.442695
        %v972 = vpow.pop %v971
        %v973 = vmul.f32 %v949, 1.442695
        %v974 = vpow.pop %v973
        %v975 = vmul.f32 %v950, 1.442695
        %v976 = vpow.pop %v975
        %v977 = vmul.f32 %v951, 1.442695
        %v978 = vpow.pop %v977
        %v979 = vmul.f32 %v952, 1.442695
        %v980 = vpow.pop %v979
        %v981 = vmul.f32 %v953, 1.442695
        %v982 = vpow.pop %v981
        %v983 = vmul.f32 %v954, 1.442695
        %v984 = vpow.pop %v983
        %v985 = vmul.f32 %v955, 1.442695
        %v986 = vpow.pop %v985
        %v987 = vmul.f32 %v956, 1.442695
        %v988 = vpow.pop %v987
        %v989 = vadd.f32 %v958, 1.0
        %v990 = vadd.f32 %v960, 1.0
        %v991 = vadd.f32 %v962, 1.0
        %v992 = vadd.f32 %v964, 1.0
        %v993 = vadd.f32 %v966, 1.0
        %v994 = vadd.f32 %v968, 1.0
        %v995 = vadd.f32 %v970, 1.0
        %v996 = vadd.f32 %v972, 1.0
        %v997 = vadd.f32 %v974, 1.0
        %v998 = vadd.f32 %v976, 1.0
        %v999 = vadd.f32 %v978, 1.0
        %v1000 = vadd.f32 %v980, 1.0
        %v1001 = vadd.f32 %v982, 1.0
        %v1002 = vadd.f32 %v984, 1.0
        %v1003 = vadd.f32 %v986, 1.0
        %v1004 = vadd.f32 %v988, 1.0
        %v1005 = vrcp.pop %v989
        %v1006 = vmul.f32 1.0, %v1005
        %v1007 = vrcp.pop %v990
        %v1008 = vmul.f32 1.0, %v1007
        %v1009 = vrcp.pop %v991
        %v1010 = vmul.f32 1.0, %v1009
        %v1011 = vrcp.pop %v992
        %v1012 = vmul.f32 1.0, %v1011
        %v1013 = vrcp.pop %v993
        %v1014 = vmul.f32 1.0, %v1013
        %v1015 = vrcp.pop %v994
        %v1016 = vmul.f32 1.0, %v1015
        %v1017 = vrcp.pop %v995
        %v1018 = vmul.f32 1.0, %v1017
        %v1019 = vrcp.pop %v996
        %v1020 = vmul.f32 1.0, %v1019
        %v1021 = vrcp.pop %v997
        %v1022 = vmul.f32 1.0, %v1021
        %v1023 = vrcp.pop %v998
        %v1024 = vmul.f32 1.0, %v1023
        %v1025 = vrcp.pop %v999
        %v1026 = vmul.f32 1.0, %v1025
        %v1027 = vrcp.pop %v1000
        %v1028 = vmul.f32 1.0, %v1027
        %v1029 = vrcp.pop %v1001
        %v1030 = vmul.f32 1.0, %v1029
        %v1031 = vrcp.pop %v1002
        %v1032 = vmul.f32 1.0, %v1031
        %v1033 = vrcp.pop %v1003
        %v1034 = vmul.f32 1.0, %v1033
        %v1035 = vrcp.pop %v1004
        %v1036 = vmul.f32 1.0, %v1035
        %v1037 = vmax.f32 %v879, 0.0
        %v1038 = vmax.f32 %v882, 0.0
        %v1039 = vmax.f32 %v887, 0.0
        %v1040 = vmax.f32 %v890, 0.0
        %v1041 = vmax.f32 %v895, 0.0
        %v1042 = vmax.f32 %v898, 0.0
        %v1043 = vmax.f32 %v903, 0.0
        %v1044 = vmax.f32 %v906, 0.0
        %v1045 = vmax.f32 %v911, 0.0
        %v1046 = vmax.f32 %v914, 0.0
        %v1047 = vmax.f32 %v919, 0.0
        %v1048 = vmax.f32 %v922, 0.0
        %v1049 = vmax.f32 %v927, 0.0
        %v1050 = vmax.f32 %v930, 0.0
        %v1051 = vmax.f32 %v935, 0.0
        %v1052 = vmax.f32 %v938, 0.0
        %v1053 = vmul.f32 %v1037, %v1006
        %v1054 = vmul.f32 %v1038, %v1008
        %v1055 = vmul.f32 %v1039, %v1010
        %v1056 = vmul.f32 %v1040, %v1012
        %v1057 = vmul.f32 %v1041, %v1014
        %v1058 = vmul.f32 %v1042, %v1016
        %v1059 = vmul.f32 %v1043, %v1018
        %v1060 = vmul.f32 %v1044, %v1020
        %v1061 = vmul.f32 %v1045, %v1022
        %v1062 = vmul.f32 %v1046, %v1024
        %v1063 = vmul.f32 %v1047, %v1026
        %v1064 = vmul.f32 %v1048, %v1028
        %v1065 = vmul.f32 %v1049, %v1030
        %v1066 = vmul.f32 %v1050, %v1032
        %v1067 = vmul.f32 %v1051, %v1034
        %v1068 = vmul.f32 %v1052, %v1036
        %v1069 = vadd.f32 %v320, %v1053
        %v1070 = vadd.f32 %v321, %v1054
        %v1071 = vadd.f32 %v322, %v1055
        %v1072 = vadd.f32 %v323, %v1056
        %v1073 = vadd.f32 %v324, %v1057
        %v1074 = vadd.f32 %v325, %v1058
        %v1075 = vadd.f32 %v326, %v1059
        %v1076 = vadd.f32 %v327, %v1060
        %v1077 = vadd.f32 %v328, %v1061
        %v1078 = vadd.f32 %v329, %v1062
        %v1079 = vadd.f32 %v330, %v1063
        %v1080 = vadd.f32 %v331, %v1064
        %v1081 = vadd.f32 %v332, %v1065
        %v1082 = vadd.f32 %v333, %v1066
        %v1083 = vadd.f32 %v334, %v1067
        %v1084 = vadd.f32 %v335, %v1068
        %v1085 = vmul.f32 %v1069, %v1069
        %v1086 = vmul.f32 %v1070, %v1070
        %v1087 = vmul.f32 %v1071, %v1071
        %v1088 = vmul.f32 %v1072, %v1072
        %v1089 = vmul.f32 %v1073, %v1073
        %v1090 = vmul.f32 %v1074, %v1074
        %v1091 = vmul.f32 %v1075, %v1075
        %v1092 = vmul.f32 %v1076, %v1076
        %v1093 = vmul.f32 %v1077, %v1077
        %v1094 = vmul.f32 %v1078, %v1078
        %v1095 = vmul.f32 %v1079, %v1079
        %v1096 = vmul.f32 %v1080, %v1080
        %v1097 = vmul.f32 %v1081, %v1081
        %v1098 = vmul.f32 %v1082, %v1082
        %v1099 = vmul.f32 %v1083, %v1083
        %v1100 = vmul.f32 %v1084, %v1084
        %1101 = vadd.xlane.f32.xlu0 %v1085
        %v1102 = vpop.xlane.xlu0 %1101
        %1103 = vadd.xlane.f32.xlu0 %v1086
        %v1104 = vpop.xlane.xlu0 %1103
        %1105 = vadd.xlane.f32.xlu0 %v1087
        %v1106 = vpop.xlane.xlu0 %1105
        %1107 = vadd.xlane.f32.xlu0 %v1088
        %v1108 = vpop.xlane.xlu0 %1107
        %1109 = vadd.xlane.f32.xlu0 %v1089
        %v1110 = vpop.xlane.xlu0 %1109
        %1111 = vadd.xlane.f32.xlu0 %v1090
        %v1112 = vpop.xlane.xlu0 %1111
        %1113 = vadd.xlane.f32.xlu0 %v1091
        %v1114 = vpop.xlane.xlu0 %1113
        %1115 = vadd.xlane.f32.xlu0 %v1092
        %v1116 = vpop.xlane.xlu0 %1115
        %1117 = vadd.xlane.f32.xlu0 %v1093
        %v1118 = vpop.xlane.xlu0 %1117
        %1119 = vadd.xlane.f32.xlu0 %v1094
        %v1120 = vpop.xlane.xlu0 %1119
        %1121 = vadd.xlane.f32.xlu0 %v1095
        %v1122 = vpop.xlane.xlu0 %1121
        %1123 = vadd.xlane.f32.xlu0 %v1096
        %v1124 = vpop.xlane.xlu0 %1123
        %1125 = vadd.xlane.f32.xlu0 %v1097
        %v1126 = vpop.xlane.xlu0 %1125
        %1127 = vadd.xlane.f32.xlu0 %v1098
        %v1128 = vpop.xlane.xlu0 %1127
        %1129 = vadd.xlane.f32.xlu0 %v1099
        %v1130 = vpop.xlane.xlu0 %1129
        %1131 = vadd.xlane.f32.xlu0 %v1100
        %v1132 = vpop.xlane.xlu0 %1131
        %v1133 = vrsqrt.pop %v1102
        %v1134 = vmul.f32 %v1102, %v1133
        %vm1135 = vcmp.eq.f32.partialorder %v1102, inf
        %v1136 = vsel %vm1135, %v1102, %v1134
        %vm1137 = vcmp.eq.f32.partialorder %v1102, 0.0
        %v1138 = vand.u32 %v1102, 2147483648
        %v1139 = vsel %vm1137, %v1138, %v1136
        %v1140 = vrsqrt.pop %v1104
        %v1141 = vmul.f32 %v1104, %v1140
        %vm1142 = vcmp.eq.f32.partialorder %v1104, inf
        %v1143 = vsel %vm1142, %v1104, %v1141
        %vm1144 = vcmp.eq.f32.partialorder %v1104, 0.0
        %v1145 = vand.u32 %v1104, 2147483648
        %v1146 = vsel %vm1144, %v1145, %v1143
        %v1147 = vrsqrt.pop %v1106
        %v1148 = vmul.f32 %v1106, %v1147
        %vm1149 = vcmp.eq.f32.partialorder %v1106, inf
        %v1150 = vsel %vm1149, %v1106, %v1148
        %vm1151 = vcmp.eq.f32.partialorder %v1106, 0.0
        %v1152 = vand.u32 %v1106, 2147483648
        %v1153 = vsel %vm1151, %v1152, %v1150
        %v1154 = vrsqrt.pop %v1108
        %v1155 = vmul.f32 %v1108, %v1154
        %vm1156 = vcmp.eq.f32.partialorder %v1108, inf
        %v1157 = vsel %vm1156, %v1108, %v1155
        %vm1158 = vcmp.eq.f32.partialorder %v1108, 0.0
        %v1159 = vand.u32 %v1108, 2147483648
        %v1160 = vsel %vm1158, %v1159, %v1157
        %v1161 = vrsqrt.pop %v1110
        %v1162 = vmul.f32 %v1110, %v1161
        %vm1163 = vcmp.eq.f32.partialorder %v1110, inf
        %v1164 = vsel %vm1163, %v1110, %v1162
        %vm1165 = vcmp.eq.f32.partialorder %v1110, 0.0
        %v1166 = vand.u32 %v1110, 2147483648
        %v1167 = vsel %vm1165, %v1166, %v1164
        %v1168 = vrsqrt.pop %v1112
        %v1169 = vmul.f32 %v1112, %v1168
        %vm1170 = vcmp.eq.f32.partialorder %v1112, inf
        %v1171 = vsel %vm1170, %v1112, %v1169
        %vm1172 = vcmp.eq.f32.partialorder %v1112, 0.0
        %v1173 = vand.u32 %v1112, 2147483648
        %v1174 = vsel %vm1172, %v1173, %v1171
        %v1175 = vrsqrt.pop %v1114
        %v1176 = vmul.f32 %v1114, %v1175
        %vm1177 = vcmp.eq.f32.partialorder %v1114, inf
        %v1178 = vsel %vm1177, %v1114, %v1176
        %vm1179 = vcmp.eq.f32.partialorder %v1114, 0.0
        %v1180 = vand.u32 %v1114, 2147483648
        %v1181 = vsel %vm1179, %v1180, %v1178
        %v1182 = vrsqrt.pop %v1116
        %v1183 = vmul.f32 %v1116, %v1182
        %vm1184 = vcmp.eq.f32.partialorder %v1116, inf
        %v1185 = vsel %vm1184, %v1116, %v1183
        %vm1186 = vcmp.eq.f32.partialorder %v1116, 0.0
        %v1187 = vand.u32 %v1116, 2147483648
        %v1188 = vsel %vm1186, %v1187, %v1185
        %v1189 = vrsqrt.pop %v1118
        %v1190 = vmul.f32 %v1118, %v1189
        %vm1191 = vcmp.eq.f32.partialorder %v1118, inf
        %v1192 = vsel %vm1191, %v1118, %v1190
        %vm1193 = vcmp.eq.f32.partialorder %v1118, 0.0
        %v1194 = vand.u32 %v1118, 2147483648
        %v1195 = vsel %vm1193, %v1194, %v1192
        %v1196 = vrsqrt.pop %v1120
        %v1197 = vmul.f32 %v1120, %v1196
        %vm1198 = vcmp.eq.f32.partialorder %v1120, inf
        %v1199 = vsel %vm1198, %v1120, %v1197
        %vm1200 = vcmp.eq.f32.partialorder %v1120, 0.0
        %v1201 = vand.u32 %v1120, 2147483648
        %v1202 = vsel %vm1200, %v1201, %v1199
        %v1203 = vrsqrt.pop %v1122
        %v1204 = vmul.f32 %v1122, %v1203
        %vm1205 = vcmp.eq.f32.partialorder %v1122, inf
        %v1206 = vsel %vm1205, %v1122, %v1204
        %vm1207 = vcmp.eq.f32.partialorder %v1122, 0.0
        %v1208 = vand.u32 %v1122, 2147483648
        %v1209 = vsel %vm1207, %v1208, %v1206
        %v1210 = vrsqrt.pop %v1124
        %v1211 = vmul.f32 %v1124, %v1210
        %vm1212 = vcmp.eq.f32.partialorder %v1124, inf
        %v1213 = vsel %vm1212, %v1124, %v1211
        %vm1214 = vcmp.eq.f32.partialorder %v1124, 0.0
        %v1215 = vand.u32 %v1124, 2147483648
        %v1216 = vsel %vm1214, %v1215, %v1213
        %v1217 = vrsqrt.pop %v1126
        %v1218 = vmul.f32 %v1126, %v1217
        %vm1219 = vcmp.eq.f32.partialorder %v1126, inf
        %v1220 = vsel %vm1219, %v1126, %v1218
        %vm1221 = vcmp.eq.f32.partialorder %v1126, 0.0
        %v1222 = vand.u32 %v1126, 2147483648
        %v1223 = vsel %vm1221, %v1222, %v1220
        %v1224 = vrsqrt.pop %v1128
        %v1225 = vmul.f32 %v1128, %v1224
        %vm1226 = vcmp.eq.f32.partialorder %v1128, inf
        %v1227 = vsel %vm1226, %v1128, %v1225
        %vm1228 = vcmp.eq.f32.partialorder %v1128, 0.0
        %v1229 = vand.u32 %v1128, 2147483648
        %v1230 = vsel %vm1228, %v1229, %v1227
        %v1231 = vrsqrt.pop %v1130
        %v1232 = vmul.f32 %v1130, %v1231
        %vm1233 = vcmp.eq.f32.partialorder %v1130, inf
        %v1234 = vsel %vm1233, %v1130, %v1232
        %vm1235 = vcmp.eq.f32.partialorder %v1130, 0.0
        %v1236 = vand.u32 %v1130, 2147483648
        %v1237 = vsel %vm1235, %v1236, %v1234
        %v1238 = vrsqrt.pop %v1132
        %v1239 = vmul.f32 %v1132, %v1238
        %vm1240 = vcmp.eq.f32.partialorder %v1132, inf
        %v1241 = vsel %vm1240, %v1132, %v1239
        %vm1242 = vcmp.eq.f32.partialorder %v1132, 0.0
        %v1243 = vand.u32 %v1132, 2147483648
        %v1244 = vsel %vm1242, %v1243, %v1241
        %v1245 = vmax.f32 %v1139, 1e-12
        %v1246 = vmax.f32 %v1146, 1e-12
        %v1247 = vmax.f32 %v1153, 1e-12
        %v1248 = vmax.f32 %v1160, 1e-12
        %v1249 = vmax.f32 %v1167, 1e-12
        %v1250 = vmax.f32 %v1174, 1e-12
        %v1251 = vmax.f32 %v1181, 1e-12
        %v1252 = vmax.f32 %v1188, 1e-12
        %v1253 = vmax.f32 %v1195, 1e-12
        %v1254 = vmax.f32 %v1202, 1e-12
        %v1255 = vmax.f32 %v1209, 1e-12
        %v1256 = vmax.f32 %v1216, 1e-12
        %v1257 = vmax.f32 %v1223, 1e-12
        %v1258 = vmax.f32 %v1230, 1e-12
        %v1259 = vmax.f32 %v1237, 1e-12
        %v1260 = vmax.f32 %v1244, 1e-12
        %v1261 = vrcp.pop %v1245
        %v1262 = vmul.f32 %v1069, %v1261
        %v1263 = vrcp.pop %v1246
        %v1264 = vmul.f32 %v1070, %v1263
        %v1265 = vrcp.pop %v1247
        %v1266 = vmul.f32 %v1071, %v1265
        %v1267 = vrcp.pop %v1248
        %v1268 = vmul.f32 %v1072, %v1267
        %v1269 = vrcp.pop %v1249
        %v1270 = vmul.f32 %v1073, %v1269
        %v1271 = vrcp.pop %v1250
        %v1272 = vmul.f32 %v1074, %v1271
        %v1273 = vrcp.pop %v1251
        %v1274 = vmul.f32 %v1075, %v1273
        %v1275 = vrcp.pop %v1252
        %v1276 = vmul.f32 %v1076, %v1275
        %v1277 = vrcp.pop %v1253
        %v1278 = vmul.f32 %v1077, %v1277
        %v1279 = vrcp.pop %v1254
        %v1280 = vmul.f32 %v1078, %v1279
        %v1281 = vrcp.pop %v1255
        %v1282 = vmul.f32 %v1079, %v1281
        %v1283 = vrcp.pop %v1256
        %v1284 = vmul.f32 %v1080, %v1283
        %v1285 = vrcp.pop %v1257
        %v1286 = vmul.f32 %v1081, %v1285
        %v1287 = vrcp.pop %v1258
        %v1288 = vmul.f32 %v1082, %v1287
        %v1289 = vrcp.pop %v1259
        %v1290 = vmul.f32 %v1083, %v1289
        %v1291 = vrcp.pop %v1260
        %v1292 = vmul.f32 %v1084, %v1291
        %1293 = vst [vmem:[%s305] sm:$0xff] %v1262
        %1294 = vst [vmem:[%s305 + $0x8] sm:$0xff] %v1264
        %1295 = vst [vmem:[%s305 + $0x10] sm:$0xff] %v1266
        %1296 = vst [vmem:[%s305 + $0x18] sm:$0xff] %v1268
        %1297 = vst [vmem:[%s305 + $0x20] sm:$0xff] %v1270
        %1298 = vst [vmem:[%s305 + $0x28] sm:$0xff] %v1272
        %1299 = vst [vmem:[%s305 + $0x30] sm:$0xff] %v1274
        %1300 = vst [vmem:[%s305 + $0x38] sm:$0xff] %v1276
        %1301 = vst [vmem:[%s305 + $0x40] sm:$0xff] %v1278
        %1302 = vst [vmem:[%s305 + $0x48] sm:$0xff] %v1280
        %1303 = vst [vmem:[%s305 + $0x50] sm:$0xff] %v1282
        %1304 = vst [vmem:[%s305 + $0x58] sm:$0xff] %v1284
        %1305 = vst [vmem:[%s305 + $0x60] sm:$0xff] %v1286
        %1306 = vst [vmem:[%s305 + $0x68] sm:$0xff] %v1288
        %1307 = vst [vmem:[%s305 + $0x70] sm:$0xff] %v1290
        %1308 = vst [vmem:[%s305 + $0x78] sm:$0xff] %v1292
        %s1309 = sand.u32 %s166, 1
        %s1310 = scalar_lea.sflag [#allocation4], %s1309
        %s1311 = sand.u32 %s166, 1
        %s1312 = smul.addr %s1311, 128
        %s1313 = scalar_lea.vmem [#allocation8], %s1312
        // Predicated region
        $region57: #{class_update_forward.1} parent=43 // pred_check
          %p1314 = pneg %p176
        $region58: #{class_update_forward.1} parent=43 // pred_check_branch
          %1316 = sbr.rel (%p1314) target = $region60
        $region59: #{class_update_forward.1} parent=43 // pred_region
          %s1317 = smul.u32 16, %s22
          %s1319 = ssub.s32 2048, 2048
          %1320 = vsyncadd %s1310, %s1319
          %s1321 = smul.addr %s1317, 128
          %s1322 = scalar_lea.hbm %s6, %s1321
          %s1323 = sshll.u32 %s1313, 4
          %s1324 = int_to_ptr.vmem [resolvable:$true] %s1323
          %1329 = dma.vmem_to_hbm [thread:$0]  %s1324, 2048, %s1322, %s1310, 128, 128, 8
        $region60: #{class_update_forward.1} parent=43 // pred_fallthru
          _
      $region44: #{class_update_forward.1} parent=5 // pred_fallthru
        _
      %p1330 = scmp.le.s32.totalorder 2, %s17
      // Predicated region
      $region61: #{class_update_forward.1} parent=5 // pred_check
        %p1331 = pneg %p1330
      $region62: #{class_update_forward.1} parent=5 // pred_check_branch
        %1333 = sbr.rel (%p1331) target = $region64
      $region63: #{class_update_forward.1} parent=5 // pred_region
        %s1334 = ssub.s32 %s17, 2
        // Predicated region
        $region65: #{class_update_forward.1} parent=63 // pred_check
          %p1335 = pneg %p182
        $region66: #{class_update_forward.1} parent=63 // pred_check_branch
          %1337 = sbr.rel (%p1335) target = $region68
        $region67: #{class_update_forward.1} parent=63 // pred_region
          %s1338 = sand.u32 %s167, 1
          %s1339 = scalar_lea.sflag [#allocation4], %s1338
          %s1340 = sand.u32 %s167, 1
          %s1341 = smul.addr %s1340, 128
          %s1342 = scalar_lea.vmem [#allocation8], %s1341
          %1343 = dma.done %s1339, 2048
        $region68: #{class_update_forward.1} parent=63 // pred_fallthru
          _
      $region64: #{class_update_forward.1} parent=5 // pred_fallthru
        _
    $region6: #{class_update_forward.1} parent=1 // loop_footer
      %s21 = sadd.s32 1, %s17
    $region7: #{class_update_forward.1} parent=1 // loop_footer_branch
      %16 = sbr.rel target = $region3
    $region8: #{class_update_forward.1} parent=1 // loop_exit
      _
    %1344 = vsyncpa [#allocation3], 1
    %s1345 = scalar_lea.sflag [#allocation3], 1
    %1346 = vsyncpa %s1345, 1
    %1347 = vsyncpa [#allocation6], 1
    %1348 = vsyncpa [#allocation4], 1
    %s1349 = scalar_lea.sflag [#allocation4], 1
    %1350 = vsyncpa %s1349, 1

</llo_original>
